<compile_context>
chip_gen: v7x
topology: tpu7x:2x2x1
jax: 0.10.0
libtpu: 0.0.40
codegen_flags: <defaults>
</compile_context>

<pallas_src>
import functools

import jax
import jax.numpy as jnp
from jax.experimental import pallas as pl
from jax.experimental.pallas import tpu as pltpu


def _l_color_kernel(x_ref, o_ref, acc_ref, *, inv_hw):
    k = pl.program_id(1)

    @pl.when(k == 0)
    def _init():
        acc_ref[...] = jnp.zeros_like(acc_ref)

    # Hot path: sublane-only reduce into a lane-dense (TB,3,W) f32 accumulator.
    # Upcast is fused into the reduction (no materialized f32 copy of the tile).
    acc_ref[...] += jnp.sum(x_ref[...], axis=2, dtype=jnp.float32)

    # Epilogue once per batch-group (last reduction step only): cross-lane
    # reduce, mean scale, channel diffs, sqrt, narrow output store.
    @pl.when(k == pl.num_programs(1) - 1)
    def _finalize():
        mean = jnp.sum(acc_ref[...], axis=-1) * inv_hw     # (TB, 3)
        mr = mean[:, 0:1]
        mg = mean[:, 1:2]
        mb = mean[:, 2:3]
        drg = (mr - mg) ** 2
        drb = (mr - mb) ** 2
        dgb = (mb - mg) ** 2
        m = jnp.sqrt(drg * drg + drb * drb + dgb * dgb)    # (TB, 1)
        o_ref[...] = m.reshape(o_ref.shape).astype(o_ref.dtype)


def _device_defaults():
    """Per-generation defaults: (default block bytes, vmem-limit cap)."""
    try:
        kind = jax.devices()[0].device_kind.lower()
    except Exception:  # pragma: no cover - defensive
        kind = ""
    if "v5" in kind or "v6" in kind:
        # 128 MiB physical VMEM: bigger blocks, generous scoped limit.
        return 16 * 1024 * 1024, 96 * 1024 * 1024
    # v7x (64 MiB VMEM per TC) or unknown: stay conservative.
    return 8 * 1024 * 1024, 48 * 1024 * 1024


def _sublane_multiple(itemsize):
    if itemsize >= 4:
        return 8
    if itemsize == 2:
        return 16
    return 32


def _choose_tiles(b, c, h, w, itemsize, max_block_bytes):
    """Pick (TB, TH): images-per-step and rows-per-step.

    Rules:
      * block bytes <= max_block_bytes (with headroom for double buffering),
      * TH divides H and is a multiple of the packed sublane count
        (8 for 4-byte, 16 for 2-byte, 32 for 1-byte dtypes) or TH == H,
      * TB divides B; tiny images are batched to ~4 MiB/step,
      * when B >= 2, TB is capped so the parallel grid axis has >= 2 steps.
    """
    sub = _sublane_multiple(itemsize)
    img_bytes = c * h * w * itemsize

    if img_bytes <= max_block_bytes:
        # Full image per step; batch several images per step for tiny inputs.
        target = min(max_block_bytes, 4 * 1024 * 1024)
        want = max(1, target // img_bytes)
        if b >= 2:
            want = min(want, b // 2)   # keep >=2 parallel steps (v7x 2 TCs)
        tb = 1
        for d in range(1, b + 1):
            if b % d == 0 and d <= want:
                tb = d
        return tb, h

    # Tile the H axis: largest layout-legal divisor under the byte cap.
    row_bytes = c * w * itemsize
    max_rows = max(sub, max_block_bytes // row_bytes)
    for cand in range(min(h - 1, max_rows), sub - 1, -1):
        if h % cand == 0 and cand % sub == 0:
            return 1, cand

    # Graceful fallback: smallest layout-legal divisor of H (may exceed the
    # byte cap; vmem_limit is scaled to the actual block in l_color()).
    for cand in range(sub, h, sub):
        if h % cand == 0:
            return 1, cand

    # TODO(synk): pathological H (no divisor that is a multiple of `sub`)
    # falls back to the full-image block, which may not fit VMEM on v7x.
    return 1, h


def l_color(x, *, max_block_bytes=None):
    """x: (B, 3, H, W) float32/bfloat16 -> (B, 1, 1, 1) float32.

    Note: output is float32 regardless of input dtype (f32 accumulation inside
    the kernel); this matches the JAX reference below. PyTorch would return the
    input dtype.
    """
    b, c, h, w = x.shape
    assert c == 3, "L_color expects 3 channels (RGB)"

    default_block, vmem_cap = _device_defaults()
    if max_block_bytes is None:
        max_block_bytes = default_block
    # Floor on block bytes so per-channel slab DMAs stay large / not
    # descriptor-bound.
    max_block_bytes = max(int(max_block_bytes), 512 * 1024)

    itemsize = jnp.dtype(x.dtype).itemsize
    tb, th = _choose_tiles(b, c, h, w, itemsize, max_block_bytes)
    grid = (b // tb, h // th)

    block_bytes = tb * c * th * w * itemsize
    acc_bytes = tb * 8 * w * 4                    # (TB,3,W) f32, 3 pads to 8 sublanes
    # Double-buffered input + scratch + headroom; capped per-generation
    # (48 MiB on v7x's 64 MiB VMEM, 96 MiB on 128 MiB parts).
    vmem_limit = int(min(vmem_cap,
                         max(16 * 1024 * 1024,
                             4 * block_bytes + acc_bytes + (2 << 20))))

    kernel = functools.partial(_l_color_kernel, inv_hw=1.0 / (h * w))

    return pl.pallas_call(
        kernel,
        out_shape=jax.ShapeDtypeStruct((b, 1, 1, 1), jnp.float32),
        grid_spec=pltpu.PrefetchScalarGridSpec(
            num_scalar_prefetch=0,
            grid=grid,
            in_specs=[pl.BlockSpec((tb, c, th, w), lambda i, k: (i, 0, k, 0))],
            out_specs=pl.BlockSpec((tb, 1, 1, 1), lambda i, k: (i, 0, 0, 0)),
            scratch_shapes=[pltpu.VMEM((tb, 3, w), jnp.float32)],
        ),
        compiler_params=pltpu.CompilerParams(
            dimension_semantics=("parallel", "arbitrary"),
            vmem_limit_bytes=vmem_limit,
        ),
    )(x)


def l_color_ref(x):
    # Pure-JAX reference mirroring the PyTorch forward (f32 math).
    xf = x.astype(jnp.float32)
    mean_rgb = jnp.mean(xf, axis=(2, 3), keepdims=True)          # (B,3,1,1)
    mr = mean_rgb[:, 0:1]
    mg = mean_rgb[:, 1:2]
    mb = mean_rgb[:, 2:3]
    drg = (mr - mg) ** 2
    drb = (mr - mb) ** 2
    dgb = (mb - mg) ** 2
    return jnp.sqrt(drg ** 2 + drb ** 2 + dgb ** 2)


if __name__ == "__main__":
    key = jax.random.PRNGKey(0)
    # Distinct per-channel scales so channel-mean differences are O(0.1) and the
    # (numerically ill-conditioned) 4th-power output is well above noise.
    chan_scale = jnp.array([1.0, 0.7, 0.4], jnp.float32).reshape(1, 3, 1, 1)

    # 1) Small image, single-step full-image path.
    B, C, H, W = 2, 3, 16, 16
    x = jax.random.uniform(key, (B, C, H, W), dtype=jnp.float32) * chan_scale
    out = jax.block_until_ready(l_color(x))
    ref = l_color_ref(x)
    assert out.shape == (B, 1, 1, 1)
    assert jnp.allclose(out, ref, atol=1e-6, rtol=1e-4), (out, ref)

    # 2) Force the H-tiled multi-step accumulation path (f32).
    key2 = jax.random.PRNGKey(0)
    x2 = jax.random.uniform(key2, (2, 3, 512, 512), dtype=jnp.float32) * chan_scale
    out2 = jax.block_until_ready(l_color(x2, max_block_bytes=512 * 1024))
    ref2 = l_color_ref(x2)
    assert jnp.allclose(out2, ref2, atol=1e-6, rtol=1e-3), (out2, ref2)

    # 3) bf16 input, single-step path (f32 accumulation inside the kernel).
    xb = x.astype(jnp.bfloat16)
    out3 = jax.block_until_ready(l_color(xb))
    ref3 = l_color_ref(xb)
    assert jnp.allclose(out3, ref3, atol=1e-6, rtol=1e-3), (out3, ref3)

    # 4) bf16 H-tiled path (TH forced to a multiple of 16 for 2-byte packing).
    xb2 = x2.astype(jnp.bfloat16)
    out4 = jax.block_until_ready(l_color(xb2, max_block_bytes=512 * 1024))
    ref4 = l_color_ref(xb2)
    assert jnp.allclose(out4, ref4, atol=1e-6, rtol=1e-3), (out4, ref4)

    print("KERNEL_OK")
</pallas_src>

<mosaic_0001>
module attributes {stable_mosaic.version = 11 : i64} {
  func.func @_l_color_kernel(%arg0: i32, %arg1: i32, %arg2: memref<1x3x16x16xf32, #tpu.memory_space<vmem>>, %arg3: memref<1x1x1x1xf32, #tpu.memory_space<vmem>>, %arg4: memref<1x3x16xf32, #tpu.memory_space<vmem>>) attributes {dimension_semantics = [#tpu.dimension_semantics<parallel>, #tpu.dimension_semantics<arbitrary>], iteration_bounds = array<i64: 2, 1>, scalar_prefetch = 0 : i64, scratch_operands = 1 : i64, tpu.core_type = #tpu.core_type<tc>, window_params = [{transform_indices = @transform_0, window_bounds = array<i64: 1, 3, 16, 16>}, {transform_indices = @transform_1, window_bounds = array<i64: 1, 1, 1, 1>}]} {
    %c0_i32 = arith.constant 0 : i32
    %0 = arith.cmpi eq, %arg1, %c0_i32 : i32
    %1 = arith.extui %0 : i1 to i32
    %c0_i32_0 = arith.constant 0 : i32
    %2 = arith.cmpi ne, %1, %c0_i32_0 : i32
    scf.if %2 {
      %cst_12 = arith.constant 0.000000e+00 : f32
      %11 = vector.broadcast %cst_12 : f32 to vector<1x3x16xf32>
      %c0_13 = arith.constant 0 : index
      %c0_14 = arith.constant 0 : index
      %c0_15 = arith.constant 0 : index
      %12 = vector.load %arg4[%c0_13, %c0_14, %c0_15] : memref<1x3x16xf32, #tpu.memory_space<vmem>>, vector<1x3x16xf32>
      tpu.vector_store %arg4[%c0_13, %c0_14, %c0_15], %11 {strides = array<i32>} : memref<1x3x16xf32, #tpu.memory_space<vmem>>, vector<1x3x16xf32>,
    } else {
    }
    %c0 = arith.constant 0 : index
    %c0_1 = arith.constant 0 : index
    %c0_2 = arith.constant 0 : index
    %3 = vector.load %arg4[%c0, %c0_1, %c0_2] : memref<1x3x16xf32, #tpu.memory_space<vmem>>, vector<1x3x16xf32>
    %c0_3 = arith.constant 0 : index
    %c0_4 = arith.constant 0 : index
    %c0_5 = arith.constant 0 : index
    %c0_6 = arith.constant 0 : index
    %4 = vector.load %arg2[%c0_3, %c0_4, %c0_5, %c0_6] : memref<1x3x16x16xf32, #tpu.memory_space<vmem>>, vector<1x3x16x16xf32>
    %cst = arith.constant dense<0.000000e+00> : vector<1x3x16xf32>
    %5 = vector.multi_reduction <add>, %4, %cst [2] : vector<1x3x16x16xf32> to vector<1x3x16xf32>
    %6 = arith.addf %3, %5 : vector<1x3x16xf32>
    %c0_7 = arith.constant 0 : index
    %c0_8 = arith.constant 0 : index
    %c0_9 = arith.constant 0 : index
    %7 = vector.load %arg4[%c0_7, %c0_8, %c0_9] : memref<1x3x16xf32, #tpu.memory_space<vmem>>, vector<1x3x16xf32>
    tpu.vector_store %arg4[%c0_7, %c0_8, %c0_9], %6 {strides = array<i32>} : memref<1x3x16xf32, #tpu.memory_space<vmem>>, vector<1x3x16xf32>,
    %c0_i32_10 = arith.constant 0 : i32
    %8 = arith.cmpi eq, %arg1, %c0_i32_10 : i32
    %9 = arith.extui %8 : i1 to i32
    %c0_i32_11 = arith.constant 0 : i32
    %10 = arith.cmpi ne, %9, %c0_i32_11 : i32
    scf.if %10 {
      %c0_12 = arith.constant 0 : index
      %c0_13 = arith.constant 0 : index
      %c0_14 = arith.constant 0 : index
      %11 = vector.load %arg4[%c0_12, %c0_13, %c0_14] : memref<1x3x16xf32, #tpu.memory_space<vmem>>, vector<1x3x16xf32>
      %cst_15 = arith.constant dense<0.000000e+00> : vector<1x3xf32>
      %12 = vector.multi_reduction <add>, %11, %cst_15 [2] : vector<1x3x16xf32> to vector<1x3xf32>
      %cst_16 = arith.constant 3.906250e-03 : f32
      %13 = vector.broadcast %cst_16 : f32 to vector<1x3xf32>
      %14 = arith.mulf %12, %13 : vector<1x3xf32>
      %15 = vector.extract_strided_slice %14 {offsets = [0, 0], sizes = [1, 1], strides = [1, 1]} : vector<1x3xf32> to vector<1x1xf32>
      %16 = vector.extract_strided_slice %14 {offsets = [0, 1], sizes = [1, 1], strides = [1, 1]} : vector<1x3xf32> to vector<1x1xf32>
      %17 = vector.extract_strided_slice %14 {offsets = [0, 2], sizes = [1, 1], strides = [1, 1]} : vector<1x3xf32> to vector<1x1xf32>
      %18 = arith.subf %15, %16 : vector<1x1xf32>
      %19 = arith.mulf %18, %18 : vector<1x1xf32>
      %20 = arith.subf %15, %17 : vector<1x1xf32>
      %21 = arith.mulf %20, %20 : vector<1x1xf32>
      %22 = arith.subf %17, %16 : vector<1x1xf32>
      %23 = arith.mulf %22, %22 : vector<1x1xf32>
      %24 = arith.mulf %19, %19 : vector<1x1xf32>
      %25 = arith.mulf %21, %21 : vector<1x1xf32>
      %26 = arith.addf %24, %25 : vector<1x1xf32>
      %27 = arith.mulf %23, %23 : vector<1x1xf32>
      %28 = arith.addf %26, %27 : vector<1x1xf32>
      %29 = math.sqrt %28 : vector<1x1xf32>
      %30 = vector.shape_cast %29 : vector<1x1xf32> to vector<1x1x1x1xf32>
      %c0_17 = arith.constant 0 : index
      %c0_18 = arith.constant 0 : index
      %c0_19 = arith.constant 0 : index
      %c0_20 = arith.constant 0 : index
      %31 = vector.load %arg3[%c0_17, %c0_18, %c0_19, %c0_20] : memref<1x1x1x1xf32, #tpu.memory_space<vmem>>, vector<1x1x1x1xf32>
      tpu.vector_store %arg3[%c0_17, %c0_18, %c0_19, %c0_20], %30 {strides = array<i32>} : memref<1x1x1x1xf32, #tpu.memory_space<vmem>>, vector<1x1x1x1xf32>,
    } else {
    }
    return
  }
  func.func @transform_0(%arg0: i32, %arg1: i32) -> (i32, i32, i32, i32) {
    %c0_i32 = arith.constant 0 : i32
    %c0_i32_0 = arith.constant 0 : i32
    %c0_i32_1 = arith.constant 0 : i32
    return %arg0, %c0_i32, %arg1, %c0_i32_0 : i32, i32, i32, i32
  }
  func.func @transform_1(%arg0: i32, %arg1: i32) -> (i32, i32, i32, i32) {
    %c0_i32 = arith.constant 0 : i32
    %c0_i32_0 = arith.constant 0 : i32
    %c0_i32_1 = arith.constant 0 : i32
    %c0_i32_2 = arith.constant 0 : i32
    return %arg0, %c0_i32, %c0_i32_0, %c0_i32_1 : i32, i32, i32, i32
  }
}

</mosaic_0001>

<llo_original>
// kernel: tpu_custom_call.1
$region0: #{tpu_custom_call.1}
  #allocation0 [shape = 'u32[]', space=smem, size = 0x4, offset = 0x4, fixed_abs, tag = 'smem constant byte address 0x4 - core index']
  #allocation1 [shape = 'u32[144,128]{1,0:T(1,128)}', space=vmem, size = 0x12000, scoped, tag = 'internal scratch']
  #allocation2 [shape = 'f32[1,3,16]{2,1,0:T(4,128)}', space=vmem, size = 0x800, scoped, tag = 'scratch operand']
  %s0 = inlined_call_operand.hbm [shape: f32[2,3,16,16], index: 0, kind: input, shape index: {}]
  %s1 = inlined_call_operand.vmem [shape: f32[2,1,1,1], index: 1, kind: output, shape index: {}]
  %s2 = sld [smem:[#allocation0]]
  $region49: #{tpu_custom_call.1} parent=0
    _
  %s4 = ssub.s32 1, %s2
  %s5 = scalar_select 0, %s4, %s2
  $region1: #{tpu_custom_call.1} parent=0
    #allocation3 [shape = 'u8[49152]{0}', space=vmem, size = 0xc000, scoped, tag = 'input window, operand 0']
    #allocation4 [shape = 's32[2]{0}', space=sflag, size = 0x8, scoped, tag = 'scoped memory for tpu_custom_call.1']
    %6 = vsyncpa [#allocation4], 0
    %s7 = scalar_lea.sflag [#allocation4], 1
    %8 = vsyncpa %s7, 0
    loop: start=0, step=1, limit=4
    $region2: #{tpu_custom_call.1} parent=1 // loop_pre_header
      _
    $region3: #{tpu_custom_call.1} parent=1 // loop_header
      %s10 = sphi 0, %s14
      %p11 = scmp.ge.s32.totalorder %s10, 4
      %s17 = sphi 0, %s29
      %s18 = sphi 0, %s25
      %s19 = sphi 0, %s17
      %s20 = sphi 0, %s18
      %s21 = sphi 0, %s19
      %s22 = sphi 0, %s20
      %s34 = sphi 0, %s36
      %s37 = sphi 0, %s34
      %s38 = sphi 0, %s37
      %s54 = sphi 0, %s38
      %s60 = sphi 0, %s62
      %s63 = sphi 0, %s60
      %s64 = sphi 0, %s63
      %s80 = sphi 0, %s64
    $region4: #{tpu_custom_call.1} parent=1 // loop_header_branch
      %13 = sbr.rel (%p11) target = $region8
    $region5: #{tpu_custom_call.1} parent=1 // loop_body
      %s15 = ssub.s32 %s10, 1
      %s16 = ssub.s32 %s10, 2
      %s23 = sadd.s32 1, %s18
      %p24 = scmp.ge.s32.totalorder %s23, 1
      %s25 = scalar_select %p24, 0, %s23
      %s26 = sadd.s32 1, %s17
      %s27 = scalar_select %p24, %s26, %s17
      %p28 = scmp.ge.s32.totalorder %s27, 2
      %s29 = scalar_select %p28, 0, %s27
      %s30 = ssub.s32 %s17, %s29
      %s31 = ssub.s32 %s18, %s25
      %s32 = sor.u32 %s30, %s31
      %p33 = scmp.eq.s32.totalorder %s32, 0
      %s35 = sadd.s32 %s34, 1
      %s36 = scalar_select %p33, %s34, %s35
      %p39 = pneg %p33
      %p40 = scmp.eq.s32.totalorder %s10, 1
      %p41 = por %p39, %p40
      %p42 = scmp.ne.s32.totalorder %s34, %s37
      %p43 = scmp.eq.s32.totalorder %s10, 0
      %p44 = por %p42, %p43
      %p45 = scmp.ne.s32.totalorder %s34, %s37
      %p46 = scmp.eq.s32.totalorder %s15, 1
      %p47 = por %p45, %p46
      %p48 = scmp.ne.s32.totalorder %s37, %s38
      %p49 = scmp.eq.s32.totalorder %s15, 0
      %p50 = por %p48, %p49
      %p51 = scmp.ne.s32.totalorder %s37, %s38
      %p52 = scmp.eq.s32.totalorder %s16, 1
      %p53 = por %p51, %p52
      %p55 = scmp.ne.s32.totalorder %s38, %s54
      %p56 = scmp.eq.s32.totalorder %s16, 0
      %p57 = por %p55, %p56
      %s58 = ssub.s32 %s17, %s29
      %p59 = scmp.eq.s32.totalorder %s58, 0
      %s61 = sadd.s32 %s60, 1
      %s62 = scalar_select %p59, %s60, %s61
      %p65 = pneg %p59
      %p66 = scmp.eq.s32.totalorder %s10, 1
      %p67 = por %p65, %p66
      %p68 = scmp.ne.s32.totalorder %s60, %s63
      %p69 = scmp.eq.s32.totalorder %s10, 0
      %p70 = por %p68, %p69
      %p71 = scmp.ne.s32.totalorder %s60, %s63
      %p72 = scmp.eq.s32.totalorder %s15, 1
      %p73 = por %p71, %p72
      %p74 = scmp.ne.s32.totalorder %s63, %s64
      %p75 = scmp.eq.s32.totalorder %s15, 0
      %p76 = por %p74, %p75
      %p77 = scmp.ne.s32.totalorder %s63, %s64
      %p78 = scmp.eq.s32.totalorder %s16, 1
      %p79 = por %p77, %p78
      %p81 = scmp.ne.s32.totalorder %s64, %s80
      %p82 = scmp.eq.s32.totalorder %s16, 0
      %p83 = por %p81, %p82
      %p84 = scmp.le.s32.totalorder 1, %s10
      %p85 = scmp.lt.s32.totalorder %s10, 3
      %p86 = pnand %p84, %p85
      %p87 = pneg %p86
      // Predicated region
      $region9: #{tpu_custom_call.1} parent=5 // pred_check
        _
      $region10: #{tpu_custom_call.1} parent=5 // pred_check_branch
        %89 = sbr.rel (%p86) target = $region12
      $region11: #{tpu_custom_call.1} parent=5 // pred_region
        %s90 = ssub.s32 %s10, 1
      $region12: #{tpu_custom_call.1} parent=5 // pred_fallthru
        _
      %p91 = scmp.lt.s32.totalorder %s10, 2
      // Predicated region
      $region13: #{tpu_custom_call.1} parent=5 // pred_check
        %p92 = pneg %p91
      $region14: #{tpu_custom_call.1} parent=5 // pred_check_branch
        %94 = sbr.rel (%p92) target = $region16
      $region15: #{tpu_custom_call.1} parent=5 // pred_region
        // Predicated region
        $region17: #{tpu_custom_call.1} parent=15 // pred_check
          %p95 = pneg %p44
        $region18: #{tpu_custom_call.1} parent=15 // pred_check_branch
          %97 = sbr.rel (%p95) target = $region20
        $region19: #{tpu_custom_call.1} parent=15 // pred_region
          %s98 = sand.u32 %s34, 1
          %s99 = scalar_lea.sflag [#allocation4], %s98
          %s100 = sand.u32 %s34, 1
          %s101 = smul.addr %s100, 48
          %s102 = scalar_lea.vmem [#allocation3], %s101
          %s103 = smul.u32 2, %s18
          %s105 = ssub.s32 768, 768
          %106 = vsyncadd %s99, %s105
          %s107 = smul.addr %s17, 6
          %s108 = sadd.s32 %s103, %s107
          %s109 = smul.addr %s108, 128
          %s110 = scalar_lea.hbm %s0, %s109
          %s111 = sshll.u32 %s102, 4
          %s112 = int_to_ptr.vmem [resolvable:$true] %s111
          %117 = dma.hbm_to_vmem [thread:$0]  %s110, 768, %s112, %s99, 128, 128, 8
        $region20: #{tpu_custom_call.1} parent=15 // pred_fallthru
          _
      $region16: #{tpu_custom_call.1} parent=5 // pred_fallthru
        _
      %p118 = scmp.le.s32.totalorder 1, %s10
      %p119 = scmp.lt.s32.totalorder %s10, 3
      %p120 = pnand %p118, %p119
      %p121 = pneg %p120
      // Predicated region
      $region21: #{tpu_custom_call.1} parent=5 // pred_check
        _
      $region22: #{tpu_custom_call.1} parent=5 // pred_check_branch
        %123 = sbr.rel (%p120) target = $region24
      $region23: #{tpu_custom_call.1} parent=5 // pred_region
        %s124 = ssub.s32 %s10, 1
        %s125 = sand.u32 %s37, 1
        %s126 = scalar_lea.sflag [#allocation4], %s125
        %s127 = sand.u32 %s37, 1
        %s128 = smul.addr %s127, 48
        %s129 = scalar_lea.vmem [#allocation3], %s128
        // Predicated region
        $region25: #{tpu_custom_call.1} parent=23 // pred_check
          %p130 = pneg %p50
        $region26: #{tpu_custom_call.1} parent=23 // pred_check_branch
          %132 = sbr.rel (%p130) target = $region28
        $region27: #{tpu_custom_call.1} parent=23 // pred_region
          %133 = dma.done %s126, 768
        $region28: #{tpu_custom_call.1} parent=23 // pred_fallthru
          _
        %s134 = sand.u32 %s37, 1
        %s135 = scalar_lea.sflag [#allocation4], %s134
        %s136 = sand.u32 %s37, 1
        %s137 = smul.addr %s136, 48
        %s138 = scalar_lea.vmem [#allocation3], %s137
        %p139 = pneg %p50
        %p140 = pneg %p47
        %p141 = pneg %p76
        %p142 = pneg %p73
        %p143 = scmp.lt.s32.totalorder %s19, 1
        %s144 = scalar_select %p143, %s19, 1
        %s145 = scalar_lea.vmem %s1, %s144
        %s146 = smul.u32 2, %s20
        %p147 = scmp.lt.s32.totalorder %s19, 1
        %s148 = scalar_select %p147, %s19, 1
        %s149 = scalar_lea.vmem %s1, %s148
        %p150 = scmp.eq.s32.totalorder %s20, 0
        // Predicated region
        $region29: #{tpu_custom_call.1} parent=23 // pred_check
          %p151 = pneg %p150
        $region30: #{tpu_custom_call.1} parent=23 // pred_check_branch
          %153 = sbr.rel (%p151) target = $region32
        $region31: #{tpu_custom_call.1} parent=23 // pred_region
          %vm154 = vcmask 124928
          %155 = vst.msk [vmem:[#allocation2] sm:$0x7] %vm154, 0.0
        $region32: #{tpu_custom_call.1} parent=23 // pred_fallthru
          _
        %v156 = vld [vmem:[#allocation2] sm:$0x7]
        %v157 = vld [vmem:[%s129] sm:$0xff]
        %v158 = vld [vmem:[%s129 + $0x8] sm:$0xff]
        %v159 = vld [vmem:[%s129 + $0x10] sm:$0xff]
        %v160 = vld [vmem:[%s129 + $0x18] sm:$0xff]
        %v161 = vld [vmem:[%s129 + $0x20] sm:$0xff]
        %v162 = vld [vmem:[%s129 + $0x28] sm:$0xff]
        %vm163 = vcmask 130048
        %v164 = vsel %vm163, %v157, 0.0
        %v165 = vsel %vm163, %v158, 0.0
        %v166 = vadd.f32 %v164, %v165
        %v167 = vrot.slane %v166, 4
        %v168 = vadd.f32 %v166, %v167
        %v169 = vrot.slane %v168, 2
        %v170 = vadd.f32 %v168, %v169
        %v171 = vrot.slane %v170, 1
        %v172 = vadd.f32 %v170, %v171
        %v173 = vsel %vm163, %v159, 0.0
        %v174 = vsel %vm163, %v160, 0.0
        %v175 = vadd.f32 %v173, %v174
        %v176 = vrot.slane %v175, 4
        %v177 = vadd.f32 %v175, %v176
        %v178 = vrot.slane %v177, 2
        %v179 = vadd.f32 %v177, %v178
        %v180 = vrot.slane %v179, 1
        %v181 = vadd.f32 %v179, %v180
        %v182 = vsel %vm163, %v161, 0.0
        %v183 = vsel %vm163, %v162, 0.0
        %v184 = vadd.f32 %v182, %v183
        %v185 = vrot.slane %v184, 4
        %v186 = vadd.f32 %v184, %v185
        %v187 = vrot.slane %v186, 2
        %v188 = vadd.f32 %v186, %v187
        %v189 = vrot.slane %v188, 1
        %v190 = vadd.f32 %v188, %v189
        %vm194 = vcmask 1041409
        %v195 = vsel %vm194, %v181, %v172
        %vm196 = vcmask 1042434
        %v197 = vsel %vm196, %v190, %v195
        %v199 = vadd.f32 %v156, %v197
        %vm200 = vcmask 124928
        %201 = vst.msk [vmem:[#allocation2] sm:$0x7] %vm200, %v199
        // Predicated region
        $region33: #{tpu_custom_call.1} parent=23 // pred_check
          %p202 = pneg %p150
        $region34: #{tpu_custom_call.1} parent=23 // pred_check_branch
          %204 = sbr.rel (%p202) target = $region36
        $region35: #{tpu_custom_call.1} parent=23 // pred_region
          %v205 = vld [vmem:[#allocation2] sm:$0x7]
          %v206 = vsel %vm200, %v205, 0.0
          %207 = vadd.xlane.f32.xlu0 %v206
          %v208 = vpop.xlane.xlu0 %207
          %v209 = vmul.f32 %v208, 0.00390625
          %v211 = vrot.slane %v209, 1
          %v213 = vsub.f32 %v209, %v211
          %v214 = vmul.f32 %v213, %v213
          %v215 = vrot.slane %v209, 2
          %v217 = vsub.f32 %v209, %v215
          %v218 = vmul.f32 %v217, %v217
          %v219 = vrot.slane %v209, 7
          %v221 = vsub.f32 %v209, %v219
          %v222 = vmul.f32 %v221, %v221
          %v223 = vmul.f32 %v214, %v214
          %v224 = vmul.f32 %v218, %v218
          %v225 = vadd.f32 %v223, %v224
          %v226 = vmul.f32 %v222, %v222
          %v228 = vrot.slane %v226, 2
          %v230 = vadd.f32 %v225, %v228
          %v231 = vrsqrt.pop %v230
          %v232 = vmul.f32 %v230, %v231
          %vm233 = vcmp.eq.f32.partialorder %v230, inf
          %v234 = vsel %vm233, %v230, %v232
          %vm235 = vcmp.eq.f32.partialorder %v230, 0.0
          %v236 = vand.u32 %v230, 2147483648
          %v237 = vsel %vm235, %v236, %v234
          %vm238 = vcmask 0
          %239 = vst.msk [vmem:[%s149] sm:$0x1] %vm238, %v237
        $region36: #{tpu_custom_call.1} parent=23 // pred_fallthru
          _
        %p240 = scmp.lt.s32.totalorder %s19, 1
        %s241 = scalar_select %p240, %s19, 1
        %s242 = scalar_lea.vmem %s1, %s241
        // Predicated region
        $region37: #{tpu_custom_call.1} parent=23 // pred_check
          %p243 = pneg %p73
        $region38: #{tpu_custom_call.1} parent=23 // pred_check_branch
          %245 = sbr.rel (%p243) target = $region40
        $region39: #{tpu_custom_call.1} parent=23 // pred_region
          _
        $region40: #{tpu_custom_call.1} parent=23 // pred_fallthru
          _
      $region24: #{tpu_custom_call.1} parent=5 // pred_fallthru
        _
      %p246 = scmp.le.s32.totalorder 2, %s10
      // Predicated region
      $region41: #{tpu_custom_call.1} parent=5 // pred_check
        %p247 = pneg %p246
      $region42: #{tpu_custom_call.1} parent=5 // pred_check_branch
        %249 = sbr.rel (%p247) target = $region44
      $region43: #{tpu_custom_call.1} parent=5 // pred_region
        %s250 = ssub.s32 %s10, 2
        // Predicated region
        $region45: #{tpu_custom_call.1} parent=43 // pred_check
          %p251 = pneg %p79
        $region46: #{tpu_custom_call.1} parent=43 // pred_check_branch
          %253 = sbr.rel (%p251) target = $region48
        $region47: #{tpu_custom_call.1} parent=43 // pred_region
          %p254 = scmp.lt.s32.totalorder %s21, 1
          %s255 = scalar_select %p254, %s21, 1
          %s256 = scalar_lea.vmem %s1, %s255
        $region48: #{tpu_custom_call.1} parent=43 // pred_fallthru
          _
      $region44: #{tpu_custom_call.1} parent=5 // pred_fallthru
        _
    $region6: #{tpu_custom_call.1} parent=1 // loop_footer
      %s14 = sadd.s32 1, %s10
    $region7: #{tpu_custom_call.1} parent=1 // loop_footer_branch
      %9 = sbr.rel target = $region3
    $region8: #{tpu_custom_call.1} parent=1 // loop_exit
      _
    %257 = vsyncpa [#allocation4], 1
    %s258 = scalar_lea.sflag [#allocation4], 1
    %259 = vsyncpa %s258, 1

</llo_original>
